<compile_context>
chip_gen: v6e
topology: v6e:2x2x1
jax: 0.10.0
libtpu: 0.0.40
codegen_flags: <defaults>
</compile_context>

<pallas_src>
import jax
import jax.numpy as jnp
from jax import lax
from jax.experimental import pallas as pl
from jax.experimental.pallas import tpu as pltpu


def _auto_block_b(m, b, c, itemsize, tile_budget=2 << 20):
    """Largest multiple-of-8 divisor of B with an input tile <= ~2 MiB, then shrunk until
    the grid has >=4 steps (when B allows) so DMA overlaps compute."""
    if b % 8 != 0:
        return b  # tiny / ragged batch: single full-batch tile (== full dim, still legal)
    best = 8
    cand = 8
    while cand <= b:
        if b % cand == 0 and m * cand * c * itemsize <= tile_budget:
            best = cand
        cand += 8
    while b // best < 4 and best > 8 and best % 16 == 0 and b % (best // 2) == 0:
        best //= 2
    return best


def _make_kernel(m_models, batch, n_classes, tile_b):
    inv_b = 1.0 / float(batch)
    inv_bc = 1.0 / float(batch * n_classes)
    inv_m1 = 1.0 / float(m_models - 1)
    c_f = float(n_classes)

    def kernel(out_ref, tgt_ref, loss_ref, acc_e_ref, acc_r_ref):
        bt = pl.program_id(1)  # inner ("arbitrary") batch-tile axis

        @pl.when(bt == 0)
        def _init():
            acc_e_ref[...] = jnp.zeros_like(acc_e_ref)
            acc_r_ref[...] = jnp.zeros_like(acc_r_ref)

        tgt = tgt_ref[...]                                                  # (TB, 1) int32
        cls = lax.broadcasted_iota(jnp.int32, (tile_b, n_classes), 1)       # (TB, C)
        onehot = cls == tgt                                                 # (TB, C) bool

        def body(i, carry):
            s1, e_acc, row_acc = carry
            o = out_ref[i].astype(jnp.float32)                              # (TB, C) one slice
            row_max = jnp.max(o, axis=-1, keepdims=True)                    # (TB, 1)
            sum_exp = jnp.sum(jnp.exp(o - row_max), axis=-1, keepdims=True)  # (TB, 1)
            lse = row_max + jnp.log(sum_exp)                                # (TB, 1)
            xlogy = jnp.where(o == 0.0, jnp.float32(0.0), o * jnp.log(o))   # xlogy(o, o)
            e_acc = e_acc + (xlogy + inv_m1 * (o * o))                      # fold s2 term
            s1 = s1 + o
            row_acc = row_acc + lse
            return s1, e_acc, row_acc

        init = (jnp.zeros((tile_b, n_classes), jnp.float32),
                jnp.zeros((tile_b, n_classes), jnp.float32),
                jnp.zeros((tile_b, 1), jnp.float32))
        s1, e_acc, row_acc = lax.fori_loop(0, m_models, body, init, unroll=True)

        # Lane/sublane-parallel per-step accumulation (pure VPU adds); scaling and the
        # single cross-lane reduce happen only in the finalize branch.
        #   e part:  sum_i xlogy(o_i) - (s1^2 - s2)/(M-1)  - C * s1[b, y_b]
        #            (the C factor turns the 1/(B*C) finalize scale into 1/B for the gather)
        acc_e_ref[...] += (e_acc - inv_m1 * (s1 * s1)
                           - c_f * jnp.where(onehot, s1, jnp.float32(0.0)))
        acc_r_ref[...] += row_acc                                           # sum_i lse_i

        @pl.when(bt == pl.num_programs(1) - 1)
        def _finalize():
            total = inv_bc * jnp.sum(acc_e_ref[...]) + inv_b * jnp.sum(acc_r_ref[...])
            loss_ref[...] = total + jnp.zeros_like(loss_ref)

    return kernel


def online_distillation_loss(outputs, target, *, block_b=None):
    """outputs: (M, B, C) float logits (f32 or bf16); target: (B,) integer class ids."""
    m, b, c = outputs.shape
    if m < 2:
        raise ValueError("online distillation loss must have at least 2 outputs")

    itemsize = jnp.dtype(outputs.dtype).itemsize
    if block_b is None or b % block_b != 0 or (block_b % 8 != 0 and block_b != b):
        block_b = _auto_block_b(m, b, c, itemsize)

    num_tiles = b // block_b
    # v7x: split batch tiles across the 2 TensorCores; on 1-TC chips this is a free outer loop.
    n_par = 2 if (num_tiles >= 2 and num_tiles % 2 == 0) else 1
    inner = num_tiles // n_par

    tgt2d = target.astype(jnp.int32).reshape(b, 1)
    kernel = _make_kernel(m, b, c, block_b)

    # Scoped-VMEM budget: double/triple-buffered input tiles + f32 scratch/temporaries,
    # capped below v7x's 64 MiB physical VMEM.
    lane_c = max(c, 128)
    vmem_need = 3 * m * block_b * c * itemsize + 8 * block_b * lane_c * 4 + (2 << 20)
    vmem_limit = int(min(64 << 20, max(32 << 20, vmem_need)))

    cost = pl.CostEstimate(
        flops=int(10 * m * b * c),
        transcendentals=int(2 * m * b * c + m * b),
        bytes_accessed=int(m * b * c * itemsize + b * 4 + n_par * 4),
    )

    partials = pl.pallas_call(
        kernel,
        out_shape=jax.ShapeDtypeStruct((n_par, 1, 1), jnp.float32),
        grid_spec=pltpu.PrefetchScalarGridSpec(
            num_scalar_prefetch=0,
            grid=(n_par, inner),
            in_specs=[
                # Full-extent (true-size) class axis: no host-side padding pass over HBM.
                pl.BlockSpec((m, block_b, c), lambda p, bt: (0, p * inner + bt, 0)),
                pl.BlockSpec((block_b, 1), lambda p, bt: (p * inner + bt, 0)),
            ],
            out_specs=pl.BlockSpec((1, 1, 1), lambda p, bt: (p, 0, 0)),
            scratch_shapes=[
                pltpu.VMEM((block_b, c), jnp.float32),   # lane-parallel elementwise acc
                pltpu.VMEM((block_b, 1), jnp.float32),   # per-row lse acc
            ],
        ),
        compiler_params=pltpu.CompilerParams(
            dimension_semantics=("parallel", "arbitrary"),
            vmem_limit_bytes=vmem_limit,
        ),
        cost_estimate=cost,
    )(outputs, tgt2d)
    return jnp.sum(partials)


def _reference(outputs, target):
    """Pure-JAX mirror of the PyTorch forward, for a correctness check."""
    m, b, c = outputs.shape
    onehot = jax.nn.one_hot(target, c, dtype=jnp.float32)
    logsm = jax.nn.log_softmax(outputs.astype(jnp.float32), axis=-1)
    total = jnp.float32(0.0)
    for i in range(m):
        cee = -jnp.mean(jnp.sum(onehot * logsm[i], axis=-1))
        other = jnp.concatenate([outputs[:i], outputs[i + 1:]], axis=0).astype(jnp.float32)
        x = jnp.mean(other, axis=0)
        t = outputs[i].astype(jnp.float32)
        kl = jnp.mean(jnp.where(t == 0.0, 0.0, t * jnp.log(t)) - t * x)
        total = total + cee + kl
    return total


if __name__ == "__main__":
    # Small deterministic shapes: M=4 model outputs, batch=32, num_classes=100.
    # C=100 exercises the un-padded (non-multiple-of-128) class axis; the auto tiler picks
    # block_b=8 -> 4 batch tiles -> grid (2 parallel, 2 arbitrary), exercising both the
    # cross-tile accumulation path and the per-core partial outputs.
    M, B, C = 4, 32, 100
    key = jax.random.PRNGKey(0)
    k_out, k_tgt = jax.random.split(key)
    # Keep logits positive so kl_div's xlogy(target, target) stays finite
    # (the PyTorch module feeds raw outputs as KLDiv "probabilities").
    outputs = jax.random.uniform(k_out, (M, B, C), dtype=jnp.float32,
                                 minval=0.05, maxval=1.5)
    target = jax.random.randint(k_tgt, (B,), 0, C, dtype=jnp.int32)

    loss = online_distillation_loss(outputs, target)
    loss = jax.block_until_ready(loss)

    ref = _reference(outputs, target)
    assert jnp.allclose(loss, ref, rtol=1e-4, atol=1e-4), (loss, ref)
    print("KERNEL_OK")
</pallas_src>

<mosaic_0001>
module attributes {stable_mosaic.version = 11 : i64} {
  func.func @kernel(%arg0: i32, %arg1: i32, %arg2: memref<4x8x100xf32, #tpu.memory_space<vmem>>, %arg3: memref<8x1xi32, #tpu.memory_space<vmem>>, %arg4: memref<1x1x1xf32, #tpu.memory_space<vmem>>, %arg5: memref<8x100xf32, #tpu.memory_space<vmem>>, %arg6: memref<8x1xf32, #tpu.memory_space<vmem>>) attributes {dimension_semantics = [#tpu.dimension_semantics<parallel>, #tpu.dimension_semantics<arbitrary>], iteration_bounds = array<i64: 2, 2>, scalar_prefetch = 0 : i64, scratch_operands = 2 : i64, tpu.core_type = #tpu.core_type<tc>, window_params = [{transform_indices = @transform_0, window_bounds = array<i64: 4, 8, 100>}, {transform_indices = @transform_1, window_bounds = array<i64: 8, 1>}, {transform_indices = @transform_2, window_bounds = array<i64: 1, 1, 1>}]} {
    %c0_i32 = arith.constant 0 : i32
    %0 = arith.cmpi eq, %arg1, %c0_i32 : i32
    %1 = arith.extui %0 : i1 to i32
    %c0_i32_0 = arith.constant 0 : i32
    %2 = arith.cmpi ne, %1, %c0_i32_0 : i32
    scf.if %2 {
      %cst_46 = arith.constant 0.000000e+00 : f32
      %128 = vector.broadcast %cst_46 : f32 to vector<8x100xf32>
      %c0_47 = arith.constant 0 : index
      %c0_48 = arith.constant 0 : index
      %129 = vector.load %arg5[%c0_47, %c0_48] : memref<8x100xf32, #tpu.memory_space<vmem>>, vector<8x100xf32>
      tpu.vector_store %arg5[%c0_47, %c0_48], %128 {strides = array<i32>} : memref<8x100xf32, #tpu.memory_space<vmem>>, vector<8x100xf32>,
      %cst_49 = arith.constant 0.000000e+00 : f32
      %130 = vector.broadcast %cst_49 : f32 to vector<8x1xf32>
      %c0_50 = arith.constant 0 : index
      %c0_51 = arith.constant 0 : index
      %131 = vector.load %arg6[%c0_50, %c0_51] : memref<8x1xf32, #tpu.memory_space<vmem>>, vector<8x1xf32>
      tpu.vector_store %arg6[%c0_50, %c0_51], %130 {strides = array<i32>} : memref<8x1xf32, #tpu.memory_space<vmem>>, vector<8x1xf32>,
    } else {
    }
    %c0 = arith.constant 0 : index
    %c0_1 = arith.constant 0 : index
    %3 = vector.load %arg3[%c0, %c0_1] : memref<8x1xi32, #tpu.memory_space<vmem>>, vector<8x1xi32>
    %4 = tpu.iota {dimensions = array<i32: 1>} : vector<8x100xi32>
    %5 = vector.broadcast %3 : vector<8x1xi32> to vector<8x100xi32>
    %6 = arith.cmpi eq, %4, %5 : vector<8x100xi32>
    %cst = arith.constant 0.000000e+00 : f32
    %7 = vector.broadcast %cst : f32 to vector<8x100xf32>
    %cst_2 = arith.constant 0.000000e+00 : f32
    %8 = vector.broadcast %cst_2 : f32 to vector<8x100xf32>
    %cst_3 = arith.constant 0.000000e+00 : f32
    %9 = vector.broadcast %cst_3 : f32 to vector<8x1xf32>
    %c0_i32_4 = arith.constant 0 : i32
    %10 = arith.index_cast %c0_i32_4 : i32 to index
    %c0_5 = arith.constant 0 : index
    %c0_6 = arith.constant 0 : index
    %11 = vector.load %arg2[%10, %c0_5, %c0_6] : memref<4x8x100xf32, #tpu.memory_space<vmem>>, vector<1x8x100xf32>
    %12 = vector.shape_cast %11 : vector<1x8x100xf32> to vector<8x100xf32>
    %cst_7 = arith.constant dense<0xFF800000> : vector<8xf32>
    %13 = vector.multi_reduction <maximumf>, %12, %cst_7 [1] : vector<8x100xf32> to vector<8xf32>
    %14 = vector.shape_cast %13 : vector<8xf32> to vector<8x1xf32>
    %15 = vector.broadcast %14 : vector<8x1xf32> to vector<8x100xf32>
    %16 = arith.subf %12, %15 : vector<8x100xf32>
    %17 = math.exp %16 : vector<8x100xf32>
    %cst_8 = arith.constant dense<0.000000e+00> : vector<8xf32>
    %18 = vector.multi_reduction <add>, %17, %cst_8 [1] : vector<8x100xf32> to vector<8xf32>
    %19 = vector.shape_cast %18 : vector<8xf32> to vector<8x1xf32>
    %20 = math.log %19 : vector<8x1xf32>
    %21 = arith.addf %14, %20 : vector<8x1xf32>
    %cst_9 = arith.constant 0.000000e+00 : f32
    %22 = vector.broadcast %cst_9 : f32 to vector<8x100xf32>
    %23 = arith.cmpf oeq, %12, %22 : vector<8x100xf32>
    %24 = math.log %12 : vector<8x100xf32>
    %25 = arith.mulf %12, %24 : vector<8x100xf32>
    %cst_10 = arith.constant 0.000000e+00 : f32
    %26 = vector.broadcast %cst_10 : f32 to vector<8x100xf32>
    %27 = arith.select %23, %26, %25 : vector<8x100xi1>, vector<8x100xf32>
    %28 = arith.mulf %12, %12 : vector<8x100xf32>
    %cst_11 = arith.constant 0.333333343 : f32
    %29 = vector.broadcast %cst_11 : f32 to vector<8x100xf32>
    %30 = arith.mulf %29, %28 : vector<8x100xf32>
    %31 = arith.addf %27, %30 : vector<8x100xf32>
    %32 = arith.addf %8, %31 : vector<8x100xf32>
    %33 = arith.addf %7, %12 : vector<8x100xf32>
    %34 = arith.addf %9, %21 : vector<8x1xf32>
    %c1_i32 = arith.constant 1 : i32
    %35 = arith.index_cast %c1_i32 : i32 to index
    %c0_12 = arith.constant 0 : index
    %c0_13 = arith.constant 0 : index
    %36 = vector.load %arg2[%35, %c0_12, %c0_13] : memref<4x8x100xf32, #tpu.memory_space<vmem>>, vector<1x8x100xf32>
    %37 = vector.shape_cast %36 : vector<1x8x100xf32> to vector<8x100xf32>
    %cst_14 = arith.constant dense<0xFF800000> : vector<8xf32>
    %38 = vector.multi_reduction <maximumf>, %37, %cst_14 [1] : vector<8x100xf32> to vector<8xf32>
    %39 = vector.shape_cast %38 : vector<8xf32> to vector<8x1xf32>
    %40 = vector.broadcast %39 : vector<8x1xf32> to vector<8x100xf32>
    %41 = arith.subf %37, %40 : vector<8x100xf32>
    %42 = math.exp %41 : vector<8x100xf32>
    %cst_15 = arith.constant dense<0.000000e+00> : vector<8xf32>
    %43 = vector.multi_reduction <add>, %42, %cst_15 [1] : vector<8x100xf32> to vector<8xf32>
    %44 = vector.shape_cast %43 : vector<8xf32> to vector<8x1xf32>
    %45 = math.log %44 : vector<8x1xf32>
    %46 = arith.addf %39, %45 : vector<8x1xf32>
    %cst_16 = arith.constant 0.000000e+00 : f32
    %47 = vector.broadcast %cst_16 : f32 to vector<8x100xf32>
    %48 = arith.cmpf oeq, %37, %47 : vector<8x100xf32>
    %49 = math.log %37 : vector<8x100xf32>
    %50 = arith.mulf %37, %49 : vector<8x100xf32>
    %cst_17 = arith.constant 0.000000e+00 : f32
    %51 = vector.broadcast %cst_17 : f32 to vector<8x100xf32>
    %52 = arith.select %48, %51, %50 : vector<8x100xi1>, vector<8x100xf32>
    %53 = arith.mulf %37, %37 : vector<8x100xf32>
    %cst_18 = arith.constant 0.333333343 : f32
    %54 = vector.broadcast %cst_18 : f32 to vector<8x100xf32>
    %55 = arith.mulf %54, %53 : vector<8x100xf32>
    %56 = arith.addf %52, %55 : vector<8x100xf32>
    %57 = arith.addf %32, %56 : vector<8x100xf32>
    %58 = arith.addf %33, %37 : vector<8x100xf32>
    %59 = arith.addf %34, %46 : vector<8x1xf32>
    %c2_i32 = arith.constant 2 : i32
    %60 = arith.index_cast %c2_i32 : i32 to index
    %c0_19 = arith.constant 0 : index
    %c0_20 = arith.constant 0 : index
    %61 = vector.load %arg2[%60, %c0_19, %c0_20] : memref<4x8x100xf32, #tpu.memory_space<vmem>>, vector<1x8x100xf32>
    %62 = vector.shape_cast %61 : vector<1x8x100xf32> to vector<8x100xf32>
    %cst_21 = arith.constant dense<0xFF800000> : vector<8xf32>
    %63 = vector.multi_reduction <maximumf>, %62, %cst_21 [1] : vector<8x100xf32> to vector<8xf32>
    %64 = vector.shape_cast %63 : vector<8xf32> to vector<8x1xf32>
    %65 = vector.broadcast %64 : vector<8x1xf32> to vector<8x100xf32>
    %66 = arith.subf %62, %65 : vector<8x100xf32>
    %67 = math.exp %66 : vector<8x100xf32>
    %cst_22 = arith.constant dense<0.000000e+00> : vector<8xf32>
    %68 = vector.multi_reduction <add>, %67, %cst_22 [1] : vector<8x100xf32> to vector<8xf32>
    %69 = vector.shape_cast %68 : vector<8xf32> to vector<8x1xf32>
    %70 = math.log %69 : vector<8x1xf32>
    %71 = arith.addf %64, %70 : vector<8x1xf32>
    %cst_23 = arith.constant 0.000000e+00 : f32
    %72 = vector.broadcast %cst_23 : f32 to vector<8x100xf32>
    %73 = arith.cmpf oeq, %62, %72 : vector<8x100xf32>
    %74 = math.log %62 : vector<8x100xf32>
    %75 = arith.mulf %62, %74 : vector<8x100xf32>
    %cst_24 = arith.constant 0.000000e+00 : f32
    %76 = vector.broadcast %cst_24 : f32 to vector<8x100xf32>
    %77 = arith.select %73, %76, %75 : vector<8x100xi1>, vector<8x100xf32>
    %78 = arith.mulf %62, %62 : vector<8x100xf32>
    %cst_25 = arith.constant 0.333333343 : f32
    %79 = vector.broadcast %cst_25 : f32 to vector<8x100xf32>
    %80 = arith.mulf %79, %78 : vector<8x100xf32>
    %81 = arith.addf %77, %80 : vector<8x100xf32>
    %82 = arith.addf %57, %81 : vector<8x100xf32>
    %83 = arith.addf %58, %62 : vector<8x100xf32>
    %84 = arith.addf %59, %71 : vector<8x1xf32>
    %c3_i32 = arith.constant 3 : i32
    %85 = arith.index_cast %c3_i32 : i32 to index
    %c0_26 = arith.constant 0 : index
    %c0_27 = arith.constant 0 : index
    %86 = vector.load %arg2[%85, %c0_26, %c0_27] : memref<4x8x100xf32, #tpu.memory_space<vmem>>, vector<1x8x100xf32>
    %87 = vector.shape_cast %86 : vector<1x8x100xf32> to vector<8x100xf32>
    %cst_28 = arith.constant dense<0xFF800000> : vector<8xf32>
    %88 = vector.multi_reduction <maximumf>, %87, %cst_28 [1] : vector<8x100xf32> to vector<8xf32>
    %89 = vector.shape_cast %88 : vector<8xf32> to vector<8x1xf32>
    %90 = vector.broadcast %89 : vector<8x1xf32> to vector<8x100xf32>
    %91 = arith.subf %87, %90 : vector<8x100xf32>
    %92 = math.exp %91 : vector<8x100xf32>
    %cst_29 = arith.constant dense<0.000000e+00> : vector<8xf32>
    %93 = vector.multi_reduction <add>, %92, %cst_29 [1] : vector<8x100xf32> to vector<8xf32>
    %94 = vector.shape_cast %93 : vector<8xf32> to vector<8x1xf32>
    %95 = math.log %94 : vector<8x1xf32>
    %96 = arith.addf %89, %95 : vector<8x1xf32>
    %cst_30 = arith.constant 0.000000e+00 : f32
    %97 = vector.broadcast %cst_30 : f32 to vector<8x100xf32>
    %98 = arith.cmpf oeq, %87, %97 : vector<8x100xf32>
    %99 = math.log %87 : vector<8x100xf32>
    %100 = arith.mulf %87, %99 : vector<8x100xf32>
    %cst_31 = arith.constant 0.000000e+00 : f32
    %101 = vector.broadcast %cst_31 : f32 to vector<8x100xf32>
    %102 = arith.select %98, %101, %100 : vector<8x100xi1>, vector<8x100xf32>
    %103 = arith.mulf %87, %87 : vector<8x100xf32>
    %cst_32 = arith.constant 0.333333343 : f32
    %104 = vector.broadcast %cst_32 : f32 to vector<8x100xf32>
    %105 = arith.mulf %104, %103 : vector<8x100xf32>
    %106 = arith.addf %102, %105 : vector<8x100xf32>
    %107 = arith.addf %82, %106 : vector<8x100xf32>
    %108 = arith.addf %83, %87 : vector<8x100xf32>
    %109 = arith.addf %84, %96 : vector<8x1xf32>
    %c4_i32 = arith.constant 4 : i32
    %c0_33 = arith.constant 0 : index
    %c0_34 = arith.constant 0 : index
    %110 = vector.load %arg5[%c0_33, %c0_34] : memref<8x100xf32, #tpu.memory_space<vmem>>, vector<8x100xf32>
    %111 = arith.mulf %108, %108 : vector<8x100xf32>
    %cst_35 = arith.constant 0.333333343 : f32
    %112 = vector.broadcast %cst_35 : f32 to vector<8x100xf32>
    %113 = arith.mulf %112, %111 : vector<8x100xf32>
    %114 = arith.subf %107, %113 : vector<8x100xf32>
    %cst_36 = arith.constant 0.000000e+00 : f32
    %115 = vector.broadcast %cst_36 : f32 to vector<8x100xf32>
    %116 = arith.select %6, %108, %115 : vector<8x100xi1>, vector<8x100xf32>
    %cst_37 = arith.constant 1.000000e+02 : f32
    %117 = vector.broadcast %cst_37 : f32 to vector<8x100xf32>
    %118 = arith.mulf %117, %116 : vector<8x100xf32>
    %119 = arith.subf %114, %118 : vector<8x100xf32>
    %120 = arith.addf %110, %119 : vector<8x100xf32>
    %c0_38 = arith.constant 0 : index
    %c0_39 = arith.constant 0 : index
    %121 = vector.load %arg5[%c0_38, %c0_39] : memref<8x100xf32, #tpu.memory_space<vmem>>, vector<8x100xf32>
    tpu.vector_store %arg5[%c0_38, %c0_39], %120 {strides = array<i32>} : memref<8x100xf32, #tpu.memory_space<vmem>>, vector<8x100xf32>,
    %c0_40 = arith.constant 0 : index
    %c0_41 = arith.constant 0 : index
    %122 = vector.load %arg6[%c0_40, %c0_41] : memref<8x1xf32, #tpu.memory_space<vmem>>, vector<8x1xf32>
    %123 = arith.addf %122, %109 : vector<8x1xf32>
    %c0_42 = arith.constant 0 : index
    %c0_43 = arith.constant 0 : index
    %124 = vector.load %arg6[%c0_42, %c0_43] : memref<8x1xf32, #tpu.memory_space<vmem>>, vector<8x1xf32>
    tpu.vector_store %arg6[%c0_42, %c0_43], %123 {strides = array<i32>} : memref<8x1xf32, #tpu.memory_space<vmem>>, vector<8x1xf32>,
    %c1_i32_44 = arith.constant 1 : i32
    %125 = arith.cmpi eq, %arg1, %c1_i32_44 : i32
    %126 = arith.extui %125 : i1 to i32
    %c0_i32_45 = arith.constant 0 : i32
    %127 = arith.cmpi ne, %126, %c0_i32_45 : i32
    scf.if %127 {
      %c0_46 = arith.constant 0 : index
      %c0_47 = arith.constant 0 : index
      %128 = vector.load %arg5[%c0_46, %c0_47] : memref<8x100xf32, #tpu.memory_space<vmem>>, vector<8x100xf32>
      %129 = vector.shape_cast %128 : vector<8x100xf32> to vector<1x8x100xf32>
      %cst_48 = arith.constant dense<0.000000e+00> : vector<1xf32>
      %130 = vector.multi_reduction <add>, %129, %cst_48 [1, 2] : vector<1x8x100xf32> to vector<1xf32>
      %131 = vector.shape_cast %130 : vector<1xf32> to vector<1x1x1xf32>
      %132 = vector.extract %131[0, 0, 0] : f32 from vector<1x1x1xf32>
      %cst_49 = arith.constant 3.125000e-04 : f32
      %133 = arith.mulf %cst_49, %132 : f32
      %c0_50 = arith.constant 0 : index
      %c0_51 = arith.constant 0 : index
      %134 = vector.load %arg6[%c0_50, %c0_51] : memref<8x1xf32, #tpu.memory_space<vmem>>, vector<8x1xf32>
      %135 = vector.shape_cast %134 : vector<8x1xf32> to vector<1x8x1xf32>
      %cst_52 = arith.constant dense<0.000000e+00> : vector<1xf32>
      %136 = vector.multi_reduction <add>, %135, %cst_52 [1, 2] : vector<1x8x1xf32> to vector<1xf32>
      %137 = vector.shape_cast %136 : vector<1xf32> to vector<1x1x1xf32>
      %138 = vector.extract %137[0, 0, 0] : f32 from vector<1x1x1xf32>
      %cst_53 = arith.constant 3.125000e-02 : f32
      %139 = arith.mulf %cst_53, %138 : f32
      %140 = arith.addf %133, %139 : f32
      %cst_54 = arith.constant 0.000000e+00 : f32
      %141 = vector.broadcast %cst_54 : f32 to vector<1x1x1xf32>
      %142 = vector.broadcast %140 : f32 to vector<1x1x1xf32>
      %143 = arith.addf %142, %141 : vector<1x1x1xf32>
      %c0_55 = arith.constant 0 : index
      %c0_56 = arith.constant 0 : index
      %c0_57 = arith.constant 0 : index
      %144 = vector.load %arg4[%c0_55, %c0_56, %c0_57] : memref<1x1x1xf32, #tpu.memory_space<vmem>>, vector<1x1x1xf32>
      tpu.vector_store %arg4[%c0_55, %c0_56, %c0_57], %143 {strides = array<i32>} : memref<1x1x1xf32, #tpu.memory_space<vmem>>, vector<1x1x1xf32>,
    } else {
    }
    return
  }
  func.func @transform_0(%arg0: i32, %arg1: i32) -> (i32, i32, i32) {
    %c2_i32 = arith.constant 2 : i32
    %0 = arith.muli %arg0, %c2_i32 : i32
    %1 = arith.addi %0, %arg1 : i32
    %c0_i32 = arith.constant 0 : i32
    %c0_i32_0 = arith.constant 0 : i32
    %c0_i32_1 = arith.constant 0 : i32
    return %c0_i32, %1, %c0_i32_0 : i32, i32, i32
  }
  func.func @transform_1(%arg0: i32, %arg1: i32) -> (i32, i32) {
    %c2_i32 = arith.constant 2 : i32
    %0 = arith.muli %arg0, %c2_i32 : i32
    %1 = arith.addi %0, %arg1 : i32
    %c0_i32 = arith.constant 0 : i32
    %c0_i32_0 = arith.constant 0 : i32
    return %1, %c0_i32 : i32, i32
  }
  func.func @transform_2(%arg0: i32, %arg1: i32) -> (i32, i32, i32) {
    %c0_i32 = arith.constant 0 : i32
    %c0_i32_0 = arith.constant 0 : i32
    %c0_i32_1 = arith.constant 0 : i32
    return %arg0, %c0_i32, %c0_i32_0 : i32, i32, i32
  }
}

</mosaic_0001>

<llo_original>
// kernel: tpu_custom_call.1
$region0: #{tpu_custom_call.1}
  #allocation0 [shape = 'u32[]', space=smem, size = 0x4, offset = 0x4, fixed_abs, tag = 'smem constant byte address 0x4 - core index']
  #allocation1 [shape = 'u32[144,128]{1,0:T(1,128)}', space=vmem, size = 0x12000, scoped, tag = 'internal scratch']
  #allocation2 [shape = 'f32[8,100]{1,0:T(8,128)}', space=vmem, size = 0x1000, scoped, tag = 'scratch operand']
  #allocation3 [shape = 'f32[8,1]{1,0:T(8,128)}', space=vmem, size = 0x1000, scoped, tag = 'scratch operand']
  %s0 = inlined_call_operand.hbm [shape: f32[4,32,100], index: 0, kind: input, shape index: {}]
  %s1 = inlined_call_operand.vmem [shape: s32[32,1], index: 1, kind: input, shape index: {}]
  %s2 = inlined_call_operand.vmem [shape: f32[2,1,1], index: 2, kind: output, shape index: {}]
  %s3 = sld [smem:[#allocation0]]
  $region53: #{tpu_custom_call.1} parent=0
    _
  %s5 = ssub.s32 1, %s3
  %s6 = scalar_select 0, %s5, %s3
  $region1: #{tpu_custom_call.1} parent=0
    #allocation4 [shape = 'u8[32768]{0}', space=vmem, size = 0x8000, scoped, tag = 'input window, operand 0']
    #allocation5 [shape = 's32[2]{0}', space=sflag, size = 0x8, scoped, tag = 'scoped memory for tpu_custom_call.1']
    %7 = vsyncpa [#allocation5], 0
    %s8 = scalar_lea.sflag [#allocation5], 1
    %9 = vsyncpa %s8, 0
    loop: start=0, step=1, limit=6
    $region2: #{tpu_custom_call.1} parent=1 // loop_pre_header
      _
    $region3: #{tpu_custom_call.1} parent=1 // loop_header
      %s11 = sphi 0, %s15
      %p12 = scmp.ge.s32.totalorder %s11, 6
      %s18 = sphi 0, %s30
      %s19 = sphi 0, %s26
      %s20 = sphi 0, %s18
      %s21 = sphi 0, %s19
      %s22 = sphi 0, %s20
      %s23 = sphi 0, %s21
      %s37 = sphi 0, %s39
      %s40 = sphi 0, %s37
      %s41 = sphi 0, %s40
      %s57 = sphi 0, %s41
      %s67 = sphi 0, %s69
      %s70 = sphi 0, %s67
      %s71 = sphi 0, %s70
      %s87 = sphi 0, %s71
      %s93 = sphi 0, %s95
      %s96 = sphi 0, %s93
      %s97 = sphi 0, %s96
      %s113 = sphi 0, %s97
    $region4: #{tpu_custom_call.1} parent=1 // loop_header_branch
      %14 = sbr.rel (%p12) target = $region8
    $region5: #{tpu_custom_call.1} parent=1 // loop_body
      %s16 = ssub.s32 %s11, 1
      %s17 = ssub.s32 %s11, 2
      %s24 = sadd.s32 1, %s19
      %p25 = scmp.ge.s32.totalorder %s24, 2
      %s26 = scalar_select %p25, 0, %s24
      %s27 = sadd.s32 1, %s18
      %s28 = scalar_select %p25, %s27, %s18
      %p29 = scmp.ge.s32.totalorder %s28, 2
      %s30 = scalar_select %p29, 0, %s28
      %s31 = smul.u32 %s18, 2
      %s32 = sadd.s32 %s31, %s19
      %s33 = smul.u32 %s30, 2
      %s34 = sadd.s32 %s33, %s26
      %s35 = ssub.s32 %s32, %s34
      %p36 = scmp.eq.s32.totalorder %s35, 0
      %s38 = sadd.s32 %s37, 1
      %s39 = scalar_select %p36, %s37, %s38
      %p42 = pneg %p36
      %p43 = scmp.eq.s32.totalorder %s11, 3
      %p44 = por %p42, %p43
      %p45 = scmp.ne.s32.totalorder %s37, %s40
      %p46 = scmp.eq.s32.totalorder %s11, 0
      %p47 = por %p45, %p46
      %p48 = scmp.ne.s32.totalorder %s37, %s40
      %p49 = scmp.eq.s32.totalorder %s16, 3
      %p50 = por %p48, %p49
      %p51 = scmp.ne.s32.totalorder %s40, %s41
      %p52 = scmp.eq.s32.totalorder %s16, 0
      %p53 = por %p51, %p52
      %p54 = scmp.ne.s32.totalorder %s40, %s41
      %p55 = scmp.eq.s32.totalorder %s17, 3
      %p56 = por %p54, %p55
      %p58 = scmp.ne.s32.totalorder %s41, %s57
      %p59 = scmp.eq.s32.totalorder %s17, 0
      %p60 = por %p58, %p59
      %s61 = smul.u32 %s18, 2
      %s62 = sadd.s32 %s61, %s19
      %s63 = smul.u32 %s30, 2
      %s64 = sadd.s32 %s63, %s26
      %s65 = ssub.s32 %s62, %s64
      %p66 = scmp.eq.s32.totalorder %s65, 0
      %s68 = sadd.s32 %s67, 1
      %s69 = scalar_select %p66, %s67, %s68
      %p72 = pneg %p66
      %p73 = scmp.eq.s32.totalorder %s11, 3
      %p74 = por %p72, %p73
      %p75 = scmp.ne.s32.totalorder %s67, %s70
      %p76 = scmp.eq.s32.totalorder %s11, 0
      %p77 = por %p75, %p76
      %p78 = scmp.ne.s32.totalorder %s67, %s70
      %p79 = scmp.eq.s32.totalorder %s16, 3
      %p80 = por %p78, %p79
      %p81 = scmp.ne.s32.totalorder %s70, %s71
      %p82 = scmp.eq.s32.totalorder %s16, 0
      %p83 = por %p81, %p82
      %p84 = scmp.ne.s32.totalorder %s70, %s71
      %p85 = scmp.eq.s32.totalorder %s17, 3
      %p86 = por %p84, %p85
      %p88 = scmp.ne.s32.totalorder %s71, %s87
      %p89 = scmp.eq.s32.totalorder %s17, 0
      %p90 = por %p88, %p89
      %s91 = ssub.s32 %s18, %s30
      %p92 = scmp.eq.s32.totalorder %s91, 0
      %s94 = sadd.s32 %s93, 1
      %s95 = scalar_select %p92, %s93, %s94
      %p98 = pneg %p92
      %p99 = scmp.eq.s32.totalorder %s11, 3
      %p100 = por %p98, %p99
      %p101 = scmp.ne.s32.totalorder %s93, %s96
      %p102 = scmp.eq.s32.totalorder %s11, 0
      %p103 = por %p101, %p102
      %p104 = scmp.ne.s32.totalorder %s93, %s96
      %p105 = scmp.eq.s32.totalorder %s16, 3
      %p106 = por %p104, %p105
      %p107 = scmp.ne.s32.totalorder %s96, %s97
      %p108 = scmp.eq.s32.totalorder %s16, 0
      %p109 = por %p107, %p108
      %p110 = scmp.ne.s32.totalorder %s96, %s97
      %p111 = scmp.eq.s32.totalorder %s17, 3
      %p112 = por %p110, %p111
      %p114 = scmp.ne.s32.totalorder %s97, %s113
      %p115 = scmp.eq.s32.totalorder %s17, 0
      %p116 = por %p114, %p115
      %p117 = scmp.le.s32.totalorder 1, %s11
      %p118 = scmp.lt.s32.totalorder %s11, 5
      %p119 = pnand %p117, %p118
      %p120 = pneg %p119
      // Predicated region
      $region9: #{tpu_custom_call.1} parent=5 // pred_check
        _
      $region10: #{tpu_custom_call.1} parent=5 // pred_check_branch
        %122 = sbr.rel (%p119) target = $region12
      $region11: #{tpu_custom_call.1} parent=5 // pred_region
        %s123 = ssub.s32 %s11, 1
      $region12: #{tpu_custom_call.1} parent=5 // pred_fallthru
        _
      %p124 = scmp.lt.s32.totalorder %s11, 4
      // Predicated region
      $region13: #{tpu_custom_call.1} parent=5 // pred_check
        %p125 = pneg %p124
      $region14: #{tpu_custom_call.1} parent=5 // pred_check_branch
        %127 = sbr.rel (%p125) target = $region16
      $region15: #{tpu_custom_call.1} parent=5 // pred_region
        // Predicated region
        $region17: #{tpu_custom_call.1} parent=15 // pred_check
          %p128 = pneg %p47
        $region18: #{tpu_custom_call.1} parent=15 // pred_check_branch
          %130 = sbr.rel (%p128) target = $region20
        $region19: #{tpu_custom_call.1} parent=15 // pred_region
          %s131 = sand.u32 %s37, 1
          %s132 = scalar_lea.sflag [#allocation5], %s131
          %s133 = sand.u32 %s37, 1
          %s134 = smul.addr %s133, 32
          %s135 = scalar_lea.vmem [#allocation4], %s134
          %s136 = smul.u32 %s18, 2
          %s137 = sadd.s32 %s136, %s19
          %s139 = ssub.s32 512, 512
          %140 = vsyncadd %s132, %s139
          %s141 = smul.addr %s137, 128
          %s142 = scalar_lea.hbm %s0, %s141
          %s143 = sshll.u32 %s135, 4
          %s144 = int_to_ptr.vmem [resolvable:$true] %s143
          %149 = dma.hbm_to_vmem [thread:$0]  %s142, 512, %s144, %s132, 512, 128, 8
        $region20: #{tpu_custom_call.1} parent=15 // pred_fallthru
          _
        // Predicated region
        $region21: #{tpu_custom_call.1} parent=15 // pred_check
          %p150 = pneg %p77
        $region22: #{tpu_custom_call.1} parent=15 // pred_check_branch
          %152 = sbr.rel (%p150) target = $region24
        $region23: #{tpu_custom_call.1} parent=15 // pred_region
          %s153 = smul.u32 %s18, 2
          %s154 = sadd.s32 %s153, %s19
          %p155 = scmp.lt.s32.totalorder %s154, 3
          %s156 = scalar_select %p155, %s154, 3
          %s157 = smul.addr %s156, 8
          %s158 = scalar_lea.vmem %s1, %s157
          %s159 = smul.u32 %s18, 2
          %s160 = sadd.s32 %s159, %s19
        $region24: #{tpu_custom_call.1} parent=15 // pred_fallthru
          _
      $region16: #{tpu_custom_call.1} parent=5 // pred_fallthru
        _
      %p161 = scmp.le.s32.totalorder 1, %s11
      %p162 = scmp.lt.s32.totalorder %s11, 5
      %p163 = pnand %p161, %p162
      %p164 = pneg %p163
      // Predicated region
      $region25: #{tpu_custom_call.1} parent=5 // pred_check
        _
      $region26: #{tpu_custom_call.1} parent=5 // pred_check_branch
        %166 = sbr.rel (%p163) target = $region28
      $region27: #{tpu_custom_call.1} parent=5 // pred_region
        %s167 = ssub.s32 %s11, 1
        %s168 = sand.u32 %s40, 1
        %s169 = scalar_lea.sflag [#allocation5], %s168
        %s170 = sand.u32 %s40, 1
        %s171 = smul.addr %s170, 32
        %s172 = scalar_lea.vmem [#allocation4], %s171
        // Predicated region
        $region29: #{tpu_custom_call.1} parent=27 // pred_check
          %p173 = pneg %p53
        $region30: #{tpu_custom_call.1} parent=27 // pred_check_branch
          %175 = sbr.rel (%p173) target = $region32
        $region31: #{tpu_custom_call.1} parent=27 // pred_region
          %176 = dma.done %s169, 512
        $region32: #{tpu_custom_call.1} parent=27 // pred_fallthru
          _
        %s177 = sand.u32 %s40, 1
        %s178 = scalar_lea.sflag [#allocation5], %s177
        %s179 = sand.u32 %s40, 1
        %s180 = smul.addr %s179, 32
        %s181 = scalar_lea.vmem [#allocation4], %s180
        %p182 = pneg %p53
        %p183 = pneg %p50
        %s184 = smul.u32 %s20, 2
        %s185 = sadd.s32 %s184, %s21
        %p186 = scmp.lt.s32.totalorder %s185, 3
        %s187 = scalar_select %p186, %s185, 3
        %s188 = smul.addr %s187, 8
        %s189 = scalar_lea.vmem %s1, %s188
        %p190 = pneg %p83
        %p191 = pneg %p80
        %p192 = pneg %p109
        %p193 = pneg %p106
        %p194 = scmp.lt.s32.totalorder %s20, 1
        %s195 = scalar_select %p194, %s20, 1
        %s196 = scalar_lea.vmem %s2, %s195
        %s197 = smul.u32 %s20, 2
        %s198 = sadd.s32 %s197, %s21
        %s199 = smul.u32 %s20, 2
        %s200 = sadd.s32 %s199, %s21
        %p201 = scmp.lt.s32.totalorder %s200, 3
        %s202 = scalar_select %p201, %s200, 3
        %s203 = smul.addr %s202, 8
        %s204 = scalar_lea.vmem %s1, %s203
        %s205 = smul.u32 %s20, 2
        %s206 = sadd.s32 %s205, %s21
        %p207 = scmp.lt.s32.totalorder %s20, 1
        %s208 = scalar_select %p207, %s20, 1
        %s209 = scalar_lea.vmem %s2, %s208
        %p210 = scmp.eq.s32.totalorder %s21, 0
        // Predicated region
        $region33: #{tpu_custom_call.1} parent=27 // pred_check
          %p211 = pneg %p210
        $region34: #{tpu_custom_call.1} parent=27 // pred_check_branch
          %213 = sbr.rel (%p211) target = $region36
        $region35: #{tpu_custom_call.1} parent=27 // pred_region
          %vm214 = vcmask 818176
          %215 = vst.msk [vmem:[#allocation2] sm:$0xff] %vm214, 0.0
          %vm216 = vcmask 7168
          %217 = vst.msk [vmem:[#allocation3] sm:$0xff] %vm216, 0.0
        $region36: #{tpu_custom_call.1} parent=27 // pred_fallthru
          _
        %v218 = vld [vmem:[%s204] sm:$0xff]
        %v219 = vlaneseq
        %v220 = vand.u32 %v219, 127
        %221 = vset.pattern.permute.xlu0 0
        %222 = vperm.xlu0 %221, %v218
        %v223 = vpop.permute.xlu0 %222
        %vm224 = vcmp.eq.s32.totalorder %v220, %v223
        %v225 = vld [vmem:[%s172] sm:$0xff]
        %vm226 = vcmask 818176
        %v227 = vsel %vm226, %v225, -inf
        %228 = vmax.xlane.f32.xlu0 %v227
        %v229 = vpop.xlane.xlu0 %228
        %v230 = vsub.f32 %v225, %v229
        %v231 = vmul.f32 %v230, 1.442695
        %v232 = vpow.pop %v231
        %v233 = vsel %vm226, %v232, 0.0
        %234 = vadd.xlane.f32.xlu0 %v233
        %v235 = vpop.xlane.xlu0 %234
        %v236 = vlog2.pop %v235
        %v237 = vmul.f32 %v236, 0.6931472
        %v238 = vadd.f32 %v229, %v237
        %vm239 = vcmp.eq.f32.partialorder %v225, 0.0
        %v240 = vlog2.pop %v225
        %v241 = vmul.f32 %v240, 0.6931472
        %v242 = vmul.f32 %v225, %v241
        %v243 = vsel %vm239, 0.0, %v242
        %v244 = vmul.f32 %v225, %v225
        %v245 = vmul.f32 %v244, 0.33333334
        %v246 = vadd.f32 %v243, %v245
        %v247 = vadd.f32 %v246, 0.0
        %v248 = vadd.f32 %v225, 0.0
        %v249 = vadd.f32 %v238, 0.0
        %s250 = scalar_lea.vmem %s172, 8 [#allocation4]
        %v251 = vld [vmem:[%s250] sm:$0xff]
        %v252 = vsel %vm226, %v251, -inf
        %253 = vmax.xlane.f32.xlu0 %v252
        %v254 = vpop.xlane.xlu0 %253
        %v255 = vsub.f32 %v251, %v254
        %v256 = vmul.f32 %v255, 1.442695
        %v257 = vpow.pop %v256
        %v258 = vsel %vm226, %v257, 0.0
        %259 = vadd.xlane.f32.xlu0 %v258
        %v260 = vpop.xlane.xlu0 %259
        %v261 = vlog2.pop %v260
        %v262 = vmul.f32 %v261, 0.6931472
        %v263 = vadd.f32 %v254, %v262
        %vm264 = vcmp.eq.f32.partialorder %v251, 0.0
        %v265 = vlog2.pop %v251
        %v266 = vmul.f32 %v265, 0.6931472
        %v267 = vmul.f32 %v251, %v266
        %v268 = vsel %vm264, 0.0, %v267
        %v269 = vmul.f32 %v251, %v251
        %v270 = vmul.f32 %v269, 0.33333334
        %v271 = vadd.f32 %v268, %v270
        %v272 = vadd.f32 %v247, %v271
        %v273 = vadd.f32 %v248, %v251
        %v274 = vadd.f32 %v249, %v263
        %s275 = scalar_lea.vmem %s172, 16 [#allocation4]
        %v276 = vld [vmem:[%s275] sm:$0xff]
        %v277 = vsel %vm226, %v276, -inf
        %278 = vmax.xlane.f32.xlu0 %v277
        %v279 = vpop.xlane.xlu0 %278
        %v280 = vsub.f32 %v276, %v279
        %v281 = vmul.f32 %v280, 1.442695
        %v282 = vpow.pop %v281
        %v283 = vsel %vm226, %v282, 0.0
        %284 = vadd.xlane.f32.xlu0 %v283
        %v285 = vpop.xlane.xlu0 %284
        %v286 = vlog2.pop %v285
        %v287 = vmul.f32 %v286, 0.6931472
        %v288 = vadd.f32 %v279, %v287
        %vm289 = vcmp.eq.f32.partialorder %v276, 0.0
        %v290 = vlog2.pop %v276
        %v291 = vmul.f32 %v290, 0.6931472
        %v292 = vmul.f32 %v276, %v291
        %v293 = vsel %vm289, 0.0, %v292
        %v294 = vmul.f32 %v276, %v276
        %v295 = vmul.f32 %v294, 0.33333334
        %v296 = vadd.f32 %v293, %v295
        %v297 = vadd.f32 %v272, %v296
        %v298 = vadd.f32 %v273, %v276
        %v299 = vadd.f32 %v274, %v288
        %s300 = scalar_lea.vmem %s172, 24 [#allocation4]
        %v301 = vld [vmem:[%s300] sm:$0xff]
        %v302 = vsel %vm226, %v301, -inf
        %303 = vmax.xlane.f32.xlu0 %v302
        %v304 = vpop.xlane.xlu0 %303
        %v305 = vsub.f32 %v301, %v304
        %v306 = vmul.f32 %v305, 1.442695
        %v307 = vpow.pop %v306
        %v308 = vsel %vm226, %v307, 0.0
        %309 = vadd.xlane.f32.xlu0 %v308
        %v310 = vpop.xlane.xlu0 %309
        %v311 = vlog2.pop %v310
        %v312 = vmul.f32 %v311, 0.6931472
        %v313 = vadd.f32 %v304, %v312
        %vm314 = vcmp.eq.f32.partialorder %v301, 0.0
        %v315 = vlog2.pop %v301
        %v316 = vmul.f32 %v315, 0.6931472
        %v317 = vmul.f32 %v301, %v316
        %v318 = vsel %vm314, 0.0, %v317
        %v319 = vmul.f32 %v301, %v301
        %v320 = vmul.f32 %v319, 0.33333334
        %v321 = vadd.f32 %v318, %v320
        %v322 = vadd.f32 %v297, %v321
        %v323 = vadd.f32 %v298, %v301
        %v324 = vadd.f32 %v299, %v313
        %v325 = vld [vmem:[#allocation2] sm:$0xff]
        %v326 = vmul.f32 %v323, %v323
        %v327 = vmul.f32 %v326, 0.33333334
        %v328 = vsub.f32 %v322, %v327
        %v329 = vsel %vm224, %v323, 0.0
        %v330 = vmul.f32 %v329, 100.0
        %v331 = vsub.f32 %v328, %v330
        %v332 = vadd.f32 %v325, %v331
        %333 = vst.msk [vmem:[#allocation2] sm:$0xff] %vm226, %v332
        %v334 = vld [vmem:[#allocation3] sm:$0xff]
        %v335 = vadd.f32 %v334, %v324
        %vm336 = vcmask 7168
        %337 = vst.msk [vmem:[#allocation3] sm:$0xff] %vm336, %v335
        %p338 = scmp.eq.s32.totalorder %s21, 1
        // Predicated region
        $region37: #{tpu_custom_call.1} parent=27 // pred_check
          %p339 = pneg %p338
        $region38: #{tpu_custom_call.1} parent=27 // pred_check_branch
          %341 = sbr.rel (%p339) target = $region40
        $region39: #{tpu_custom_call.1} parent=27 // pred_region
          %v342 = vld [vmem:[#allocation2] sm:$0xff]
          %v343 = vsel %vm226, %v342, 0.0
          %344 = vadd.xlane.f32.xlu0 %v343
          %v345 = vpop.xlane.xlu0 %344
          %v346 = vrot.slane %v345, 4
          %v347 = vadd.f32 %v345, %v346
          %v348 = vrot.slane %v347, 2
          %v349 = vadd.f32 %v347, %v348
          %v350 = vrot.slane %v349, 1
          %v351 = vadd.f32 %v349, %v350
          %s352 = vtos %v351
          %s353 = smul.f32 %s352, 0.0003125
          %v354 = vld [vmem:[#allocation3] sm:$0xff]
          %v355 = vsel %vm336, %v354, 0.0
          %356 = vadd.xlane.f32.xlu0 %v355
          %v357 = vpop.xlane.xlu0 %356
          %v358 = vrot.slane %v357, 4
          %v359 = vadd.f32 %v357, %v358
          %v360 = vrot.slane %v359, 2
          %v361 = vadd.f32 %v359, %v360
          %v362 = vrot.slane %v361, 1
          %v363 = vadd.f32 %v361, %v362
          %s364 = vtos %v363
          %s365 = smul.f32 %s364, 0.03125
          %s366 = sadd.f32 %s353, %s365
          %v367 = vstv %s366
          %v368 = vadd.f32 %v367, 0.0
          %vm369 = vcmask 0
          %370 = vst.msk [vmem:[%s209] sm:$0x1] %vm369, %v368
        $region40: #{tpu_custom_call.1} parent=27 // pred_fallthru
          _
        %p371 = scmp.lt.s32.totalorder %s20, 1
        %s372 = scalar_select %p371, %s20, 1
        %s373 = scalar_lea.vmem %s2, %s372
        // Predicated region
        $region41: #{tpu_custom_call.1} parent=27 // pred_check
          %p374 = pneg %p106
        $region42: #{tpu_custom_call.1} parent=27 // pred_check_branch
          %376 = sbr.rel (%p374) target = $region44
        $region43: #{tpu_custom_call.1} parent=27 // pred_region
          _
        $region44: #{tpu_custom_call.1} parent=27 // pred_fallthru
          _
      $region28: #{tpu_custom_call.1} parent=5 // pred_fallthru
        _
      %p377 = scmp.le.s32.totalorder 2, %s11
      // Predicated region
      $region45: #{tpu_custom_call.1} parent=5 // pred_check
        %p378 = pneg %p377
      $region46: #{tpu_custom_call.1} parent=5 // pred_check_branch
        %380 = sbr.rel (%p378) target = $region48
      $region47: #{tpu_custom_call.1} parent=5 // pred_region
        %s381 = ssub.s32 %s11, 2
        // Predicated region
        $region49: #{tpu_custom_call.1} parent=47 // pred_check
          %p382 = pneg %p112
        $region50: #{tpu_custom_call.1} parent=47 // pred_check_branch
          %384 = sbr.rel (%p382) target = $region52
        $region51: #{tpu_custom_call.1} parent=47 // pred_region
          %p385 = scmp.lt.s32.totalorder %s22, 1
          %s386 = scalar_select %p385, %s22, 1
          %s387 = scalar_lea.vmem %s2, %s386
        $region52: #{tpu_custom_call.1} parent=47 // pred_fallthru
          _
      $region48: #{tpu_custom_call.1} parent=5 // pred_fallthru
        _
    $region6: #{tpu_custom_call.1} parent=1 // loop_footer
      %s15 = sadd.s32 1, %s11
    $region7: #{tpu_custom_call.1} parent=1 // loop_footer_branch
      %10 = sbr.rel target = $region3
    $region8: #{tpu_custom_call.1} parent=1 // loop_exit
      _
    %388 = vsyncpa [#allocation5], 1
    %s389 = scalar_lea.sflag [#allocation5], 1
    %390 = vsyncpa %s389, 1

</llo_original>
